<compile_context>
chip_gen: v7x
topology: tpu7x:2x2x1
jax: 0.10.0
libtpu: 0.0.40
codegen_flags: <defaults>
</compile_context>

<pallas_src>
import jax
import jax.numpy as jnp
from jax.experimental import pallas as pl
from jax.experimental.pallas import tpu as pltpu

_LANE = 128
_SUBLANE = 8
_BN_EPS = 1e-5
_VMEM_BUDGET = 20 * 1024 * 1024      # sizing budget (safe on v5e/v6e/v7x)
_VMEM_LIMIT = 32 * 1024 * 1024       # explicit scoped-VMEM limit for Mosaic


def _round_up(x, m):
    return ((x + m - 1) // m) * m


def _pad_to(a, shape):
    pads = [(0, s - d) for d, s in zip(a.shape, shape)]
    return jnp.pad(a, pads)


def _make_kernel(num_members):
    """Kernel over one batch tile:
       out = sum_i relu(x_i @ W1'_i + b1'_i) @ W2_i  + b2_sum
    (BN already folded into W1'/b1'; dropout == identity)."""

    def kernel(*refs):
        xs = refs[:num_members]
        b2_ref = refs[4 * num_members]
        o_ref = refs[4 * num_members + 1]
        acc = None
        for m in range(num_members):
            w1_ref = refs[num_members + 3 * m]
            b1_ref = refs[num_members + 3 * m + 1]
            w2_ref = refs[num_members + 3 * m + 2]
            z = jnp.dot(xs[m][...], w1_ref[...],
                        preferred_element_type=jnp.float32)
            z = jnp.maximum(z + b1_ref[...], 0.0)      # bias + relu in f32 (VPU)
            part = jnp.dot(z.astype(w2_ref.dtype), w2_ref[...],
                           preferred_element_type=jnp.float32)
            acc = part if acc is None else acc + part
        o_ref[...] = (acc + b2_ref[...]).astype(o_ref.dtype)

    return kernel


def ensemble_forward(inputs, params, num_classes, *,
                     matmul_dtype=jnp.bfloat16,   # bf16 MXU operands by default
                     out_dtype=jnp.float32,
                     max_batch_tile=4096):
    """inputs: list of (N, h_i) arrays; params: list of per-member dicts."""
    num_members = len(inputs)
    n = inputs[0].shape[0]
    h_list = [int(x.shape[1]) for x in inputs]
    c_pad = _round_up(num_classes, _LANE)

    x_itemsize = jnp.dtype(matmul_dtype).itemsize
    out_itemsize = jnp.dtype(out_dtype).itemsize

    # ---- 1. BN fold + padding of weights (tiny O(h*h/2) work, done in XLA) ----
    w1_p, b1_p, w2_p, h2_pads = [], [], [], []
    b2_sum = jnp.zeros((1, num_classes), jnp.float32)
    for x, p in zip(inputs, params):
        xf = x.astype(jnp.float32)
        mean = jnp.mean(xf, axis=0, keepdims=True)               # full-batch stats
        var = jnp.mean((xf - mean) ** 2, axis=0, keepdims=True)  # biased (training mode)
        s = p["gamma"] * jax.lax.rsqrt(var + _BN_EPS)            # (1, h)
        t = p["beta"] - mean * s                                 # (1, h)
        w1f = s.reshape(-1, 1) * p["w1"]                         # (h, h//2), BN folded
        b1f = p["b1"] + t @ p["w1"]                              # (1, h//2), BN folded
        h2 = p["w1"].shape[1]
        h2p = _round_up(h2, _LANE)                               # lane-dense z
        h2_pads.append(h2p)
        w1_p.append(_pad_to(w1f, (w1f.shape[0], h2p)).astype(matmul_dtype))
        b1_p.append(_pad_to(b1f, (1, h2p)))                      # bias stays f32
        w2_p.append(_pad_to(p["w2"], (h2p, c_pad)).astype(matmul_dtype))
        b2_sum = b2_sum + p["b2"]                                # hoisted, added once
    b2_p = _pad_to(b2_sum, (1, c_pad))                           # f32

    # ---- 2. itemsize/buffer-aware batch-tile sizing against a VMEM budget ----
    # double-buffered x tiles + double-buffered out tile + z temp + acc
    per_row = (2 * sum(h_list) * x_itemsize
               + 2 * c_pad * out_itemsize
               + (max(h2_pads) + c_pad) * 4)
    # resident weights (default double-buffered) + f32 biases
    weights_bytes = sum(
        2 * (h * h2p * x_itemsize + h2p * 4 + h2p * c_pad * x_itemsize)
        for h, h2p in zip(h_list, h2_pads)) + 2 * c_pad * 4

    tb = max(_SUBLANE, (_VMEM_BUDGET - weights_bytes) // max(per_row, 1))
    tb = max(_SUBLANE, min(max_batch_tile, (tb // _SUBLANE) * _SUBLANE))
    # Guarantee >= 2-4 grid steps when the batch allows, so v7x's two
    # TensorCores both get work and DMA overlaps compute.
    if n >= 4 * _SUBLANE:
        min_tiles = 4
    elif n >= 2 * _SUBLANE:
        min_tiles = 2
    else:
        min_tiles = 1
    tb = min(tb, _round_up(-(-n // min_tiles), _SUBLANE))
    n_pad = _round_up(n, tb)

    # ---- 3. pad batch axis only (no concat, no K-dim padding) + cast to bf16 ----
    xs_p = [jnp.pad(x.astype(matmul_dtype), ((0, n_pad - n), (0, 0)))
            for x in inputs]

    # ---- 4. assemble operands / specs ----
    operands, in_specs = [], []
    for m in range(num_members):
        operands.append(xs_p[m])
        in_specs.append(pl.BlockSpec((tb, h_list[m]), lambda i: (i, 0)))
    for m in range(num_members):
        operands += [w1_p[m], b1_p[m], w2_p[m]]
        in_specs += [
            pl.BlockSpec((h_list[m], h2_pads[m]), lambda i: (0, 0)),   # W1' resident
            pl.BlockSpec((1, h2_pads[m]), lambda i: (0, 0)),           # b1' resident
            pl.BlockSpec((h2_pads[m], c_pad), lambda i: (0, 0)),       # W2 resident
        ]
    operands.append(b2_p)
    in_specs.append(pl.BlockSpec((1, c_pad), lambda i: (0, 0)))        # b2 resident

    flops = 2 * n_pad * sum(h * h2p + h2p * c_pad
                            for h, h2p in zip(h_list, h2_pads))
    bytes_accessed = (sum(n_pad * h * x_itemsize for h in h_list)
                      + n_pad * c_pad * out_itemsize
                      + sum((h * h2p + h2p * c_pad) * x_itemsize + h2p * 4
                            for h, h2p in zip(h_list, h2_pads))
                      + c_pad * 4)

    out = pl.pallas_call(
        _make_kernel(num_members),
        out_shape=jax.ShapeDtypeStruct((n_pad, c_pad), out_dtype),
        grid_spec=pltpu.PrefetchScalarGridSpec(
            num_scalar_prefetch=0,
            grid=(n_pad // tb,),
            in_specs=in_specs,
            out_specs=pl.BlockSpec((tb, c_pad), lambda i: (i, 0)),     # lane-dense store
        ),
        compiler_params=pltpu.CompilerParams(
            dimension_semantics=("parallel",),      # batch tiles split across TCs
            vmem_limit_bytes=_VMEM_LIMIT,
        ),
        cost_estimate=pl.CostEstimate(flops=int(flops), transcendentals=0,
                                      bytes_accessed=int(bytes_accessed)),
    )(*operands)

    return out[:n, :num_classes]


def ensemble_reference(inputs, params):
    """Pure-JAX reference (unfused, mirrors the PyTorch forward)."""
    scores = 0.0
    for x, p in zip(inputs, params):
        x = x.astype(jnp.float32)
        mean = jnp.mean(x, axis=0, keepdims=True)
        var = jnp.mean((x - mean) ** 2, axis=0, keepdims=True)
        h = (x - mean) / jnp.sqrt(var + _BN_EPS)
        h = h * p["gamma"] + p["beta"]
        z = jnp.maximum(h @ p["w1"] + p["b1"], 0.0)
        scores = scores + (z @ p["w2"] + p["b2"])
    return scores


def init_params(key, hiddens, num_classes):
    params = []
    for h in hiddens:
        key, k1, k2, k3, k4, k5, k6 = jax.random.split(key, 7)
        params.append(dict(
            gamma=1.0 + 0.1 * jax.random.normal(k1, (1, h), jnp.float32),
            beta=0.1 * jax.random.normal(k2, (1, h), jnp.float32),
            w1=jax.random.normal(k3, (h, h // 2), jnp.float32) / jnp.sqrt(h),
            b1=0.1 * jax.random.normal(k4, (1, h // 2), jnp.float32),
            w2=jax.random.normal(k5, (h // 2, num_classes), jnp.float32) / jnp.sqrt(h // 2),
            b2=0.1 * jax.random.normal(k6, (1, num_classes), jnp.float32),
        ))
    return params


if __name__ == "__main__":
    hiddens = [32, 64]        # two ensemble members with different hidden sizes
    num_classes = 10
    batch = 16

    key = jax.random.PRNGKey(0)
    kx0, kx1, kp = jax.random.split(key, 3)
    inputs = [
        jax.random.normal(kx0, (batch, hiddens[0]), jnp.float32),
        jax.random.normal(kx1, (batch, hiddens[1]), jnp.float32),
    ]
    params = init_params(kp, hiddens, num_classes)

    ref = ensemble_reference(inputs, params)

    # f32 MXU operands: exact forward semantics.
    out_f32 = ensemble_forward(inputs, params, num_classes,
                               matmul_dtype=jnp.float32)
    out_f32 = jax.block_until_ready(out_f32)
    assert out_f32.shape == (batch, num_classes)
    assert jnp.allclose(out_f32, ref, atol=5e-4, rtol=5e-4), (
        f"f32 mismatch: max abs err = {jnp.max(jnp.abs(out_f32 - ref))}")

    # Default path: bf16 MXU operands (native high-rate MXU on all gens),
    # f32 accumulation and f32 bias/relu.
    out_bf16 = ensemble_forward(inputs, params, num_classes)
    out_bf16 = jax.block_until_ready(out_bf16)
    assert out_bf16.shape == (batch, num_classes)
    assert jnp.allclose(out_bf16, ref, atol=1e-1, rtol=1e-1), (
        f"bf16 mismatch: max abs err = {jnp.max(jnp.abs(out_bf16 - ref))}")

    print("KERNEL_OK")
</pallas_src>

<mosaic_0001>
module attributes {stable_mosaic.version = 11 : i64} {
  func.func @kernel(%arg0: i32, %arg1: memref<8x32xf32, #tpu.memory_space<vmem>>, %arg2: memref<8x64xf32, #tpu.memory_space<vmem>>, %arg3: memref<32x128xf32, #tpu.memory_space<vmem>>, %arg4: memref<1x128xf32, #tpu.memory_space<vmem>>, %arg5: memref<128x128xf32, #tpu.memory_space<vmem>>, %arg6: memref<64x128xf32, #tpu.memory_space<vmem>>, %arg7: memref<1x128xf32, #tpu.memory_space<vmem>>, %arg8: memref<128x128xf32, #tpu.memory_space<vmem>>, %arg9: memref<1x128xf32, #tpu.memory_space<vmem>>, %arg10: memref<8x128xf32, #tpu.memory_space<vmem>>) attributes {dimension_semantics = [#tpu.dimension_semantics<parallel>], iteration_bounds = array<i64: 2>, scalar_prefetch = 0 : i64, scratch_operands = 0 : i64, tpu.core_type = #tpu.core_type<tc>, window_params = [{transform_indices = @transform_0, window_bounds = array<i64: 8, 32>}, {transform_indices = @transform_1, window_bounds = array<i64: 8, 64>}, {pipeline_mode = #tpu.pipeline_mode<synchronous>, transform_indices = @transform_2, window_bounds = array<i64: 32, 128>}, {pipeline_mode = #tpu.pipeline_mode<synchronous>, transform_indices = @transform_3, window_bounds = array<i64: 1, 128>}, {pipeline_mode = #tpu.pipeline_mode<synchronous>, transform_indices = @transform_4, window_bounds = array<i64: 128, 128>}, {pipeline_mode = #tpu.pipeline_mode<synchronous>, transform_indices = @transform_5, window_bounds = array<i64: 64, 128>}, {pipeline_mode = #tpu.pipeline_mode<synchronous>, transform_indices = @transform_6, window_bounds = array<i64: 1, 128>}, {pipeline_mode = #tpu.pipeline_mode<synchronous>, transform_indices = @transform_7, window_bounds = array<i64: 128, 128>}, {pipeline_mode = #tpu.pipeline_mode<synchronous>, transform_indices = @transform_8, window_bounds = array<i64: 1, 128>}, {transform_indices = @transform_9, window_bounds = array<i64: 8, 128>}]} {
    %c0 = arith.constant 0 : index
    %c0_0 = arith.constant 0 : index
    %0 = vector.load %arg1[%c0, %c0_0] : memref<8x32xf32, #tpu.memory_space<vmem>>, vector<8x32xf32>
    %c0_1 = arith.constant 0 : index
    %c0_2 = arith.constant 0 : index
    %1 = vector.load %arg3[%c0_1, %c0_2] : memref<32x128xf32, #tpu.memory_space<vmem>>, vector<32x128xf32>
    %cst = arith.constant dense<0.000000e+00> : vector<8x128xf32>
    %2 = tpu.matmul %0, %1, %cst {dimension_numbers = #tpu.dot_dimension_numbers<[1], [0], [0], [1], [0, 0, 1, 1], [], []>} : vector<8x32xf32>, vector<32x128xf32>, vector<8x128xf32> -> vector<8x128xf32>
    %c0_3 = arith.constant 0 : index
    %c0_4 = arith.constant 0 : index
    %3 = vector.load %arg4[%c0_3, %c0_4] : memref<1x128xf32, #tpu.memory_space<vmem>>, vector<1x128xf32>
    %4 = vector.broadcast %3 : vector<1x128xf32> to vector<8x128xf32>
    %5 = arith.addf %2, %4 : vector<8x128xf32>
    %cst_5 = arith.constant 0.000000e+00 : f32
    %6 = vector.broadcast %cst_5 : f32 to vector<8x128xf32>
    %7 = arith.maximumf %5, %6 : vector<8x128xf32>
    %c0_6 = arith.constant 0 : index
    %c0_7 = arith.constant 0 : index
    %8 = vector.load %arg5[%c0_6, %c0_7] : memref<128x128xf32, #tpu.memory_space<vmem>>, vector<128x128xf32>
    %cst_8 = arith.constant dense<0.000000e+00> : vector<8x128xf32>
    %9 = tpu.matmul %7, %8, %cst_8 {dimension_numbers = #tpu.dot_dimension_numbers<[1], [0], [0], [1], [0, 0, 1, 1], [], []>} : vector<8x128xf32>, vector<128x128xf32>, vector<8x128xf32> -> vector<8x128xf32>
    %c0_9 = arith.constant 0 : index
    %c0_10 = arith.constant 0 : index
    %10 = vector.load %arg2[%c0_9, %c0_10] : memref<8x64xf32, #tpu.memory_space<vmem>>, vector<8x64xf32>
    %c0_11 = arith.constant 0 : index
    %c0_12 = arith.constant 0 : index
    %11 = vector.load %arg6[%c0_11, %c0_12] : memref<64x128xf32, #tpu.memory_space<vmem>>, vector<64x128xf32>
    %cst_13 = arith.constant dense<0.000000e+00> : vector<8x128xf32>
    %12 = tpu.matmul %10, %11, %cst_13 {dimension_numbers = #tpu.dot_dimension_numbers<[1], [0], [0], [1], [0, 0, 1, 1], [], []>} : vector<8x64xf32>, vector<64x128xf32>, vector<8x128xf32> -> vector<8x128xf32>
    %c0_14 = arith.constant 0 : index
    %c0_15 = arith.constant 0 : index
    %13 = vector.load %arg7[%c0_14, %c0_15] : memref<1x128xf32, #tpu.memory_space<vmem>>, vector<1x128xf32>
    %14 = vector.broadcast %13 : vector<1x128xf32> to vector<8x128xf32>
    %15 = arith.addf %12, %14 : vector<8x128xf32>
    %cst_16 = arith.constant 0.000000e+00 : f32
    %16 = vector.broadcast %cst_16 : f32 to vector<8x128xf32>
    %17 = arith.maximumf %15, %16 : vector<8x128xf32>
    %c0_17 = arith.constant 0 : index
    %c0_18 = arith.constant 0 : index
    %18 = vector.load %arg8[%c0_17, %c0_18] : memref<128x128xf32, #tpu.memory_space<vmem>>, vector<128x128xf32>
    %cst_19 = arith.constant dense<0.000000e+00> : vector<8x128xf32>
    %19 = tpu.matmul %17, %18, %cst_19 {dimension_numbers = #tpu.dot_dimension_numbers<[1], [0], [0], [1], [0, 0, 1, 1], [], []>} : vector<8x128xf32>, vector<128x128xf32>, vector<8x128xf32> -> vector<8x128xf32>
    %20 = arith.addf %9, %19 : vector<8x128xf32>
    %c0_20 = arith.constant 0 : index
    %c0_21 = arith.constant 0 : index
    %21 = vector.load %arg9[%c0_20, %c0_21] : memref<1x128xf32, #tpu.memory_space<vmem>>, vector<1x128xf32>
    %22 = vector.broadcast %21 : vector<1x128xf32> to vector<8x128xf32>
    %23 = arith.addf %20, %22 : vector<8x128xf32>
    %c0_22 = arith.constant 0 : index
    %c0_23 = arith.constant 0 : index
    %24 = vector.load %arg10[%c0_22, %c0_23] : memref<8x128xf32, #tpu.memory_space<vmem>>, vector<8x128xf32>
    tpu.vector_store %arg10[%c0_22, %c0_23], %23 {strides = array<i32>} : memref<8x128xf32, #tpu.memory_space<vmem>>, vector<8x128xf32>,
    return
  }
  func.func @transform_0(%arg0: i32) -> (i32, i32) {
    %c0_i32 = arith.constant 0 : i32
    %c0_i32_0 = arith.constant 0 : i32
    return %arg0, %c0_i32 : i32, i32
  }
  func.func @transform_1(%arg0: i32) -> (i32, i32) {
    %c0_i32 = arith.constant 0 : i32
    %c0_i32_0 = arith.constant 0 : i32
    return %arg0, %c0_i32 : i32, i32
  }
  func.func @transform_2(%arg0: i32) -> (i32, i32) {
    %c0_i32 = arith.constant 0 : i32
    %c0_i32_0 = arith.constant 0 : i32
    %c0_i32_1 = arith.constant 0 : i32
    return %c0_i32, %c0_i32_0 : i32, i32
  }
  func.func @transform_3(%arg0: i32) -> (i32, i32) {
    %c0_i32 = arith.constant 0 : i32
    %c0_i32_0 = arith.constant 0 : i32
    %c0_i32_1 = arith.constant 0 : i32
    return %c0_i32, %c0_i32_0 : i32, i32
  }
  func.func @transform_4(%arg0: i32) -> (i32, i32) {
    %c0_i32 = arith.constant 0 : i32
    %c0_i32_0 = arith.constant 0 : i32
    %c0_i32_1 = arith.constant 0 : i32
    return %c0_i32, %c0_i32_0 : i32, i32
  }
  func.func @transform_5(%arg0: i32) -> (i32, i32) {
    %c0_i32 = arith.constant 0 : i32
    %c0_i32_0 = arith.constant 0 : i32
    %c0_i32_1 = arith.constant 0 : i32
    return %c0_i32, %c0_i32_0 : i32, i32
  }
  func.func @transform_6(%arg0: i32) -> (i32, i32) {
    %c0_i32 = arith.constant 0 : i32
    %c0_i32_0 = arith.constant 0 : i32
    %c0_i32_1 = arith.constant 0 : i32
    return %c0_i32, %c0_i32_0 : i32, i32
  }
  func.func @transform_7(%arg0: i32) -> (i32, i32) {
    %c0_i32 = arith.constant 0 : i32
    %c0_i32_0 = arith.constant 0 : i32
    %c0_i32_1 = arith.constant 0 : i32
    return %c0_i32, %c0_i32_0 : i32, i32
  }
  func.func @transform_8(%arg0: i32) -> (i32, i32) {
    %c0_i32 = arith.constant 0 : i32
    %c0_i32_0 = arith.constant 0 : i32
    %c0_i32_1 = arith.constant 0 : i32
    return %c0_i32, %c0_i32_0 : i32, i32
  }
  func.func @transform_9(%arg0: i32) -> (i32, i32) {
    %c0_i32 = arith.constant 0 : i32
    %c0_i32_0 = arith.constant 0 : i32
    return %arg0, %c0_i32 : i32, i32
  }
}

</mosaic_0001>

<llo_original>
// kernel: tpu_custom_call.1
$region0: #{tpu_custom_call.1}
  #allocation0 [shape = 'u32[]', space=smem, size = 0x4, offset = 0x4, fixed_abs, tag = 'smem constant byte address 0x4 - core index']
  #allocation1 [shape = 'u32[144,128]{1,0:T(1,128)}', space=vmem, size = 0x12000, scoped, tag = 'internal scratch']
  %s0 = inlined_call_operand.hbm [shape: f32[16,32], index: 0, kind: input, shape index: {}]
  %s1 = inlined_call_operand.hbm [shape: f32[16,64], index: 1, kind: input, shape index: {}]
  %s2 = inlined_call_operand.hbm [shape: f32[32,128], index: 2, kind: input, shape index: {}]
  %s3 = inlined_call_operand.vmem [shape: f32[1,128], index: 3, kind: input, shape index: {}]
  %s4 = inlined_call_operand.hbm [shape: f32[128,128], index: 4, kind: input, shape index: {}]
  %s5 = inlined_call_operand.hbm [shape: f32[64,128], index: 5, kind: input, shape index: {}]
  %s6 = inlined_call_operand.vmem [shape: f32[1,128], index: 6, kind: input, shape index: {}]
  %s7 = inlined_call_operand.hbm [shape: f32[128,128], index: 7, kind: input, shape index: {}]
  %s8 = inlined_call_operand.vmem [shape: f32[1,128], index: 8, kind: input, shape index: {}]
  %s9 = inlined_call_operand.hbm [shape: f32[16,128], index: 9, kind: output, shape index: {}]
  %s10 = sld [smem:[#allocation0]]
  $region93: #{tpu_custom_call.1} parent=0
    _
  %s12 = ssub.s32 1, %s10
  %s13 = scalar_select 0, %s12, %s10
  $region1: #{tpu_custom_call.1} parent=0
    #allocation2 [shape = 'u8[8192]{0}', space=vmem, size = 0x2000, scoped, tag = 'input window, operand 0']
    #allocation3 [shape = 's32[2]{0}', space=sflag, size = 0x8, scoped, tag = 'scoped memory for tpu_custom_call.1']
    #allocation4 [shape = 's32[2]{0}', space=sflag, size = 0x8, scoped, tag = 'scoped memory for tpu_custom_call.1']
    #allocation5 [shape = 'u8[8192]{0}', space=vmem, size = 0x2000, scoped, tag = 'input window, operand 1']
    #allocation6 [shape = 's32[2]{0}', space=sflag, size = 0x8, scoped, tag = 'scoped memory for tpu_custom_call.1']
    #allocation7 [shape = 'u8[16384]{0}', space=vmem, size = 0x4000, scoped, tag = 'input window, operand 2, single buffered']
    #allocation8 [shape = 'u8[65536]{0}', space=vmem, size = 0x10000, scoped, tag = 'input window, operand 4, single buffered']
    #allocation9 [shape = 's32[1]{0}', space=sflag, size = 0x4, scoped, tag = 'scoped memory for tpu_custom_call.1']
    #allocation10 [shape = 'u8[32768]{0}', space=vmem, size = 0x8000, scoped, tag = 'input window, operand 5, single buffered']
    #allocation11 [shape = 'u8[65536]{0}', space=vmem, size = 0x10000, scoped, tag = 'input window, operand 7, single buffered']
    #allocation12 [shape = 's32[1]{0}', space=sflag, size = 0x4, scoped, tag = 'scoped memory for tpu_custom_call.1']
    #allocation13 [shape = 'u8[8192]{0}', space=vmem, size = 0x2000, scoped, tag = 'output window, operand 0']
    %14 = vsyncpa [#allocation3], 0
    %s15 = scalar_lea.sflag [#allocation3], 1
    %16 = vsyncpa %s15, 0
    %17 = vsyncpa [#allocation6], 0
    %s18 = scalar_lea.sflag [#allocation6], 1
    %19 = vsyncpa %s18, 0
    %20 = vsyncpa [#allocation9], 0
    %21 = vsyncpa [#allocation12], 0
    %22 = vsyncpa [#allocation4], 0
    %s23 = scalar_lea.sflag [#allocation4], 1
    %24 = vsyncpa %s23, 0
    loop: start=0, step=1, limit=4
    $region2: #{tpu_custom_call.1} parent=1 // loop_pre_header
      _
    $region3: #{tpu_custom_call.1} parent=1 // loop_header
      %s26 = sphi 0, %s30
      %p27 = scmp.ge.s32.totalorder %s26, 4
      %s36 = sphi 0, %s38
      %s39 = sphi 0, %s36
      %s40 = sphi 0, %s39
      %s56 = sphi 0, %s40
      %s62 = sphi 0, %s64
      %s65 = sphi 0, %s62
      %s66 = sphi 0, %s65
      %s82 = sphi 0, %s66
      %s86 = sphi 0, %s86
      %s88 = sphi 0, %s86
      %s89 = sphi 0, %s88
      %s103 = sphi 0, %s89
      %s107 = sphi 0, %s107
      %s109 = sphi 0, %s107
      %s110 = sphi 0, %s109
      %s124 = sphi 0, %s110
      %s128 = sphi 0, %s128
      %s130 = sphi 0, %s128
      %s131 = sphi 0, %s130
      %s145 = sphi 0, %s131
      %s149 = sphi 0, %s149
      %s151 = sphi 0, %s149
      %s152 = sphi 0, %s151
      %s166 = sphi 0, %s152
      %s170 = sphi 0, %s170
      %s172 = sphi 0, %s170
      %s173 = sphi 0, %s172
      %s187 = sphi 0, %s173
      %s191 = sphi 0, %s191
      %s193 = sphi 0, %s191
      %s194 = sphi 0, %s193
      %s208 = sphi 0, %s194
      %s212 = sphi 0, %s212
      %s214 = sphi 0, %s212
      %s215 = sphi 0, %s214
      %s229 = sphi 0, %s215
      %s235 = sphi 0, %s237
      %s238 = sphi 0, %s235
      %s239 = sphi 0, %s238
      %s255 = sphi 0, %s239
    $region4: #{tpu_custom_call.1} parent=1 // loop_header_branch
      %29 = sbr.rel (%p27) target = $region8
    $region5: #{tpu_custom_call.1} parent=1 // loop_body
      %s31 = ssub.s32 %s26, 1
      %s32 = ssub.s32 %s26, 2
      %s33 = sadd.s32 %s26, 1
      %s34 = ssub.s32 %s26, %s33
      %p35 = scmp.eq.s32.totalorder %s34, 0
      %s37 = sadd.s32 %s36, 1
      %s38 = scalar_select %p35, %s36, %s37
      %p41 = pneg %p35
      %p42 = scmp.eq.s32.totalorder %s26, 1
      %p43 = por %p41, %p42
      %p44 = scmp.ne.s32.totalorder %s36, %s39
      %p45 = scmp.eq.s32.totalorder %s26, 0
      %p46 = por %p44, %p45
      %p47 = scmp.ne.s32.totalorder %s36, %s39
      %p48 = scmp.eq.s32.totalorder %s31, 1
      %p49 = por %p47, %p48
      %p50 = scmp.ne.s32.totalorder %s39, %s40
      %p51 = scmp.eq.s32.totalorder %s31, 0
      %p52 = por %p50, %p51
      %p53 = scmp.ne.s32.totalorder %s39, %s40
      %p54 = scmp.eq.s32.totalorder %s32, 1
      %p55 = por %p53, %p54
      %p57 = scmp.ne.s32.totalorder %s40, %s56
      %p58 = scmp.eq.s32.totalorder %s32, 0
      %p59 = por %p57, %p58
      %s60 = ssub.s32 %s26, %s33
      %p61 = scmp.eq.s32.totalorder %s60, 0
      %s63 = sadd.s32 %s62, 1
      %s64 = scalar_select %p61, %s62, %s63
      %p67 = pneg %p61
      %p68 = scmp.eq.s32.totalorder %s26, 1
      %p69 = por %p67, %p68
      %p70 = scmp.ne.s32.totalorder %s62, %s65
      %p71 = scmp.eq.s32.totalorder %s26, 0
      %p72 = por %p70, %p71
      %p73 = scmp.ne.s32.totalorder %s62, %s65
      %p74 = scmp.eq.s32.totalorder %s31, 1
      %p75 = por %p73, %p74
      %p76 = scmp.ne.s32.totalorder %s65, %s66
      %p77 = scmp.eq.s32.totalorder %s31, 0
      %p78 = por %p76, %p77
      %p79 = scmp.ne.s32.totalorder %s65, %s66
      %p80 = scmp.eq.s32.totalorder %s32, 1
      %p81 = por %p79, %p80
      %p83 = scmp.ne.s32.totalorder %s66, %s82
      %p84 = scmp.eq.s32.totalorder %s32, 0
      %p85 = por %p83, %p84
      %s87 = sadd.s32 %s86, 1
      %p90 = scmp.eq.s32.totalorder %s26, 1
      %p91 = scmp.ne.s32.totalorder %s86, %s88
      %p92 = scmp.eq.s32.totalorder %s26, 0
      %p93 = por %p91, %p92
      %p94 = scmp.ne.s32.totalorder %s86, %s88
      %p95 = scmp.eq.s32.totalorder %s31, 1
      %p96 = por %p94, %p95
      %p97 = scmp.ne.s32.totalorder %s88, %s89
      %p98 = scmp.eq.s32.totalorder %s31, 0
      %p99 = por %p97, %p98
      %p100 = scmp.ne.s32.totalorder %s88, %s89
      %p101 = scmp.eq.s32.totalorder %s32, 1
      %p102 = por %p100, %p101
      %p104 = scmp.ne.s32.totalorder %s89, %s103
      %p105 = scmp.eq.s32.totalorder %s32, 0
      %p106 = por %p104, %p105
      %s108 = sadd.s32 %s107, 1
      %p111 = scmp.eq.s32.totalorder %s26, 1
      %p112 = scmp.ne.s32.totalorder %s107, %s109
      %p113 = scmp.eq.s32.totalorder %s26, 0
      %p114 = por %p112, %p113
      %p115 = scmp.ne.s32.totalorder %s107, %s109
      %p116 = scmp.eq.s32.totalorder %s31, 1
      %p117 = por %p115, %p116
      %p118 = scmp.ne.s32.totalorder %s109, %s110
      %p119 = scmp.eq.s32.totalorder %s31, 0
      %p120 = por %p118, %p119
      %p121 = scmp.ne.s32.totalorder %s109, %s110
      %p122 = scmp.eq.s32.totalorder %s32, 1
      %p123 = por %p121, %p122
      %p125 = scmp.ne.s32.totalorder %s110, %s124
      %p126 = scmp.eq.s32.totalorder %s32, 0
      %p127 = por %p125, %p126
      %s129 = sadd.s32 %s128, 1
      %p132 = scmp.eq.s32.totalorder %s26, 1
      %p133 = scmp.ne.s32.totalorder %s128, %s130
      %p134 = scmp.eq.s32.totalorder %s26, 0
      %p135 = por %p133, %p134
      %p136 = scmp.ne.s32.totalorder %s128, %s130
      %p137 = scmp.eq.s32.totalorder %s31, 1
      %p138 = por %p136, %p137
      %p139 = scmp.ne.s32.totalorder %s130, %s131
      %p140 = scmp.eq.s32.totalorder %s31, 0
      %p141 = por %p139, %p140
      %p142 = scmp.ne.s32.totalorder %s130, %s131
      %p143 = scmp.eq.s32.totalorder %s32, 1
      %p144 = por %p142, %p143
      %p146 = scmp.ne.s32.totalorder %s131, %s145
      %p147 = scmp.eq.s32.totalorder %s32, 0
      %p148 = por %p146, %p147
      %s150 = sadd.s32 %s149, 1
      %p153 = scmp.eq.s32.totalorder %s26, 1
      %p154 = scmp.ne.s32.totalorder %s149, %s151
      %p155 = scmp.eq.s32.totalorder %s26, 0
      %p156 = por %p154, %p155
      %p157 = scmp.ne.s32.totalorder %s149, %s151
      %p158 = scmp.eq.s32.totalorder %s31, 1
      %p159 = por %p157, %p158
      %p160 = scmp.ne.s32.totalorder %s151, %s152
      %p161 = scmp.eq.s32.totalorder %s31, 0
      %p162 = por %p160, %p161
      %p163 = scmp.ne.s32.totalorder %s151, %s152
      %p164 = scmp.eq.s32.totalorder %s32, 1
      %p165 = por %p163, %p164
      %p167 = scmp.ne.s32.totalorder %s152, %s166
      %p168 = scmp.eq.s32.totalorder %s32, 0
      %p169 = por %p167, %p168
      %s171 = sadd.s32 %s170, 1
      %p174 = scmp.eq.s32.totalorder %s26, 1
      %p175 = scmp.ne.s32.totalorder %s170, %s172
      %p176 = scmp.eq.s32.totalorder %s26, 0
      %p177 = por %p175, %p176
      %p178 = scmp.ne.s32.totalorder %s170, %s172
      %p179 = scmp.eq.s32.totalorder %s31, 1
      %p180 = por %p178, %p179
      %p181 = scmp.ne.s32.totalorder %s172, %s173
      %p182 = scmp.eq.s32.totalorder %s31, 0
      %p183 = por %p181, %p182
      %p184 = scmp.ne.s32.totalorder %s172, %s173
      %p185 = scmp.eq.s32.totalorder %s32, 1
      %p186 = por %p184, %p185
      %p188 = scmp.ne.s32.totalorder %s173, %s187
      %p189 = scmp.eq.s32.totalorder %s32, 0
      %p190 = por %p188, %p189
      %s192 = sadd.s32 %s191, 1
      %p195 = scmp.eq.s32.totalorder %s26, 1
      %p196 = scmp.ne.s32.totalorder %s191, %s193
      %p197 = scmp.eq.s32.totalorder %s26, 0
      %p198 = por %p196, %p197
      %p199 = scmp.ne.s32.totalorder %s191, %s193
      %p200 = scmp.eq.s32.totalorder %s31, 1
      %p201 = por %p199, %p200
      %p202 = scmp.ne.s32.totalorder %s193, %s194
      %p203 = scmp.eq.s32.totalorder %s31, 0
      %p204 = por %p202, %p203
      %p205 = scmp.ne.s32.totalorder %s193, %s194
      %p206 = scmp.eq.s32.totalorder %s32, 1
      %p207 = por %p205, %p206
      %p209 = scmp.ne.s32.totalorder %s194, %s208
      %p210 = scmp.eq.s32.totalorder %s32, 0
      %p211 = por %p209, %p210
      %s213 = sadd.s32 %s212, 1
      %p216 = scmp.eq.s32.totalorder %s26, 1
      %p217 = scmp.ne.s32.totalorder %s212, %s214
      %p218 = scmp.eq.s32.totalorder %s26, 0
      %p219 = por %p217, %p218
      %p220 = scmp.ne.s32.totalorder %s212, %s214
      %p221 = scmp.eq.s32.totalorder %s31, 1
      %p222 = por %p220, %p221
      %p223 = scmp.ne.s32.totalorder %s214, %s215
      %p224 = scmp.eq.s32.totalorder %s31, 0
      %p225 = por %p223, %p224
      %p226 = scmp.ne.s32.totalorder %s214, %s215
      %p227 = scmp.eq.s32.totalorder %s32, 1
      %p228 = por %p226, %p227
      %p230 = scmp.ne.s32.totalorder %s215, %s229
      %p231 = scmp.eq.s32.totalorder %s32, 0
      %p232 = por %p230, %p231
      %s233 = ssub.s32 %s26, %s33
      %p234 = scmp.eq.s32.totalorder %s233, 0
      %s236 = sadd.s32 %s235, 1
      %s237 = scalar_select %p234, %s235, %s236
      %p240 = pneg %p234
      %p241 = scmp.eq.s32.totalorder %s26, 1
      %p242 = por %p240, %p241
      %p243 = scmp.ne.s32.totalorder %s235, %s238
      %p244 = scmp.eq.s32.totalorder %s26, 0
      %p245 = por %p243, %p244
      %p246 = scmp.ne.s32.totalorder %s235, %s238
      %p247 = scmp.eq.s32.totalorder %s31, 1
      %p248 = por %p246, %p247
      %p249 = scmp.ne.s32.totalorder %s238, %s239
      %p250 = scmp.eq.s32.totalorder %s31, 0
      %p251 = por %p249, %p250
      %p252 = scmp.ne.s32.totalorder %s238, %s239
      %p253 = scmp.eq.s32.totalorder %s32, 1
      %p254 = por %p252, %p253
      %p256 = scmp.ne.s32.totalorder %s239, %s255
      %p257 = scmp.eq.s32.totalorder %s32, 0
      %p258 = por %p256, %p257
      %p259 = scmp.le.s32.totalorder 1, %s26
      %p260 = scmp.lt.s32.totalorder %s26, 3
      %p261 = pnand %p259, %p260
      %p262 = pneg %p261
      // Predicated region
      $region9: #{tpu_custom_call.1} parent=5 // pred_check
        _
      $region10: #{tpu_custom_call.1} parent=5 // pred_check_branch
        %264 = sbr.rel (%p261) target = $region12
      $region11: #{tpu_custom_call.1} parent=5 // pred_region
        %s265 = ssub.s32 %s26, 1
        // Predicated region
        $region13: #{tpu_custom_call.1} parent=11 // pred_check
          %p266 = pneg %p99
        $region14: #{tpu_custom_call.1} parent=11 // pred_check_branch
          %268 = sbr.rel (%p266) target = $region16
        $region15: #{tpu_custom_call.1} parent=11 // pred_region
          %s270 = ssub.s32 512, 512
          %271 = vsyncadd [#allocation6], %s270
          %s272 = sshll.u32 [#allocation7], 4
          %s273 = int_to_ptr.vmem [resolvable:$true] %s272
          %278 = dma.hbm_to_vmem [thread:$0]  %s2, 512, %s273, [#allocation6], 128, 128, 8
        $region16: #{tpu_custom_call.1} parent=11 // pred_fallthru
          _
        // Predicated region
        $region17: #{tpu_custom_call.1} parent=11 // pred_check
          %p279 = pneg %p120
        $region18: #{tpu_custom_call.1} parent=11 // pred_check_branch
          %281 = sbr.rel (%p279) target = $region20
        $region19: #{tpu_custom_call.1} parent=11 // pred_region
          _
        $region20: #{tpu_custom_call.1} parent=11 // pred_fallthru
          _
        // Predicated region
        $region21: #{tpu_custom_call.1} parent=11 // pred_check
          %p282 = pneg %p141
        $region22: #{tpu_custom_call.1} parent=11 // pred_check_branch
          %284 = sbr.rel (%p282) target = $region24
        $region23: #{tpu_custom_call.1} parent=11 // pred_region
          %s286 = ssub.s32 2048, 2048
          %287 = vsyncadd [#allocation9], %s286
          %s288 = sshll.u32 [#allocation8], 4
          %s289 = int_to_ptr.vmem [resolvable:$true] %s288
          %294 = dma.hbm_to_vmem [thread:$0]  %s4, 2048, %s289, [#allocation9], 128, 128, 8
        $region24: #{tpu_custom_call.1} parent=11 // pred_fallthru
          _
        // Predicated region
        $region25: #{tpu_custom_call.1} parent=11 // pred_check
          %p295 = pneg %p162
        $region26: #{tpu_custom_call.1} parent=11 // pred_check_branch
          %297 = sbr.rel (%p295) target = $region28
        $region27: #{tpu_custom_call.1} parent=11 // pred_region
          %s299 = ssub.s32 1024, 1024
          %300 = vsyncadd [#allocation9], %s299
          %s301 = sshll.u32 [#allocation10], 4
          %s302 = int_to_ptr.vmem [resolvable:$true] %s301
          %307 = dma.hbm_to_vmem [thread:$0]  %s5, 1024, %s302, [#allocation9], 128, 128, 8
        $region28: #{tpu_custom_call.1} parent=11 // pred_fallthru
          _
        // Predicated region
        $region29: #{tpu_custom_call.1} parent=11 // pred_check
          %p308 = pneg %p183
        $region30: #{tpu_custom_call.1} parent=11 // pred_check_branch
          %310 = sbr.rel (%p308) target = $region32
        $region31: #{tpu_custom_call.1} parent=11 // pred_region
          _
        $region32: #{tpu_custom_call.1} parent=11 // pred_fallthru
          _
        // Predicated region
        $region33: #{tpu_custom_call.1} parent=11 // pred_check
          %p311 = pneg %p204
        $region34: #{tpu_custom_call.1} parent=11 // pred_check_branch
          %313 = sbr.rel (%p311) target = $region36
        $region35: #{tpu_custom_call.1} parent=11 // pred_region
          %s315 = ssub.s32 2048, 2048
          %316 = vsyncadd [#allocation12], %s315
          %s317 = sshll.u32 [#allocation11], 4
          %s318 = int_to_ptr.vmem [resolvable:$true] %s317
          %323 = dma.hbm_to_vmem [thread:$0]  %s7, 2048, %s318, [#allocation12], 128, 128, 8
        $region36: #{tpu_custom_call.1} parent=11 // pred_fallthru
          _
        // Predicated region
        $region37: #{tpu_custom_call.1} parent=11 // pred_check
          %p324 = pneg %p225
        $region38: #{tpu_custom_call.1} parent=11 // pred_check_branch
          %326 = sbr.rel (%p324) target = $region40
        $region39: #{tpu_custom_call.1} parent=11 // pred_region
          _
        $region40: #{tpu_custom_call.1} parent=11 // pred_fallthru
          _
      $region12: #{tpu_custom_call.1} parent=5 // pred_fallthru
        _
      %p327 = scmp.lt.s32.totalorder %s26, 2
      // Predicated region
      $region41: #{tpu_custom_call.1} parent=5 // pred_check
        %p328 = pneg %p327
      $region42: #{tpu_custom_call.1} parent=5 // pred_check_branch
        %330 = sbr.rel (%p328) target = $region44
      $region43: #{tpu_custom_call.1} parent=5 // pred_region
        // Predicated region
        $region45: #{tpu_custom_call.1} parent=43 // pred_check
          %p331 = pneg %p46
        $region46: #{tpu_custom_call.1} parent=43 // pred_check_branch
          %333 = sbr.rel (%p331) target = $region48
        $region47: #{tpu_custom_call.1} parent=43 // pred_region
          %s334 = sand.u32 %s36, 1
          %s335 = scalar_lea.sflag [#allocation3], %s334
          %s336 = sand.u32 %s36, 1
          %s337 = smul.addr %s336, 8
          %s338 = scalar_lea.vmem [#allocation2], %s337
          %s340 = ssub.s32 128, 128
          %341 = vsyncadd %s335, %s340
          %s342 = smul.addr %s26, 128
          %s343 = scalar_lea.hbm %s0, %s342
          %s345 = sshll.u32 %s338, 4
          %s346 = int_to_ptr.vmem [resolvable:$true] %s345
          %348 = dma.hbm_to_vmem [thread:$0]  %s343, 128, %s346, %s335
        $region48: #{tpu_custom_call.1} parent=43 // pred_fallthru
          _
        // Predicated region
        $region49: #{tpu_custom_call.1} parent=43 // pred_check
          %p349 = pneg %p72
        $region50: #{tpu_custom_call.1} parent=43 // pred_check_branch
          %351 = sbr.rel (%p349) target = $region52
        $region51: #{tpu_custom_call.1} parent=43 // pred_region
          %s352 = sand.u32 %s26, 1
          %s353 = scalar_lea.sflag [#allocation6], %s352
          %s354 = sand.u32 %s62, 1
          %s355 = smul.addr %s354, 8
          %s356 = scalar_lea.vmem [#allocation5], %s355
          %s358 = ssub.s32 128, 128
          %359 = vsyncadd %s353, %s358
          %s360 = smul.addr %s26, 128
          %s361 = scalar_lea.hbm %s1, %s360
          %s363 = sshll.u32 %s356, 4
          %s364 = int_to_ptr.vmem [resolvable:$true] %s363
          %366 = dma.hbm_to_vmem [thread:$0]  %s361, 128, %s364, %s353
        $region52: #{tpu_custom_call.1} parent=43 // pred_fallthru
          _
      $region44: #{tpu_custom_call.1} parent=5 // pred_fallthru
        _
      %p367 = scmp.le.s32.totalorder 1, %s26
      %p368 = scmp.lt.s32.totalorder %s26, 3
      %p369 = pnand %p367, %p368
      %p370 = pneg %p369
      // Predicated region
      $region53: #{tpu_custom_call.1} parent=5 // pred_check
        _
      $region54: #{tpu_custom_call.1} parent=5 // pred_check_branch
        %372 = sbr.rel (%p369) target = $region56
      $region55: #{tpu_custom_call.1} parent=5 // pred_region
        %s373 = ssub.s32 %s26, 1
        %s374 = sand.u32 %s39, 1
        %s375 = scalar_lea.sflag [#allocation3], %s374
        %s376 = sand.u32 %s39, 1
        %s377 = smul.addr %s376, 8
        %s378 = scalar_lea.vmem [#allocation2], %s377
        // Predicated region
        $region57: #{tpu_custom_call.1} parent=55 // pred_check
          %p379 = pneg %p52
        $region58: #{tpu_custom_call.1} parent=55 // pred_check_branch
          %381 = sbr.rel (%p379) target = $region60
        $region59: #{tpu_custom_call.1} parent=55 // pred_region
          %382 = dma.done %s375, 128
        $region60: #{tpu_custom_call.1} parent=55 // pred_fallthru
          _
        %s383 = sand.u32 %s31, 1
        %s384 = scalar_lea.sflag [#allocation6], %s383
        %s385 = sand.u32 %s65, 1
        %s386 = smul.addr %s385, 8
        %s387 = scalar_lea.vmem [#allocation5], %s386
        // Predicated region
        $region61: #{tpu_custom_call.1} parent=55 // pred_check
          %p388 = pneg %p78
        $region62: #{tpu_custom_call.1} parent=55 // pred_check_branch
          %390 = sbr.rel (%p388) target = $region64
        $region63: #{tpu_custom_call.1} parent=55 // pred_region
          %391 = dma.done %s384, 128
        $region64: #{tpu_custom_call.1} parent=55 // pred_fallthru
          _
        // Predicated region
        $region65: #{tpu_custom_call.1} parent=55 // pred_check
          %p392 = pneg %p99
        $region66: #{tpu_custom_call.1} parent=55 // pred_check_branch
          %394 = sbr.rel (%p392) target = $region68
        $region67: #{tpu_custom_call.1} parent=55 // pred_region
          %395 = dma.done [#allocation6], 512
        $region68: #{tpu_custom_call.1} parent=55 // pred_fallthru
          _
        // Predicated region
        $region69: #{tpu_custom_call.1} parent=55 // pred_check
          %p396 = pneg %p141
        $region70: #{tpu_custom_call.1} parent=55 // pred_check_branch
          %398 = sbr.rel (%p396) target = $region72
        $region71: #{tpu_custom_call.1} parent=55 // pred_region
          %399 = dma.done [#allocation9], 2048
        $region72: #{tpu_custom_call.1} parent=55 // pred_fallthru
          _
        // Predicated region
        $region73: #{tpu_custom_call.1} parent=55 // pred_check
          %p400 = pneg %p162
        $region74: #{tpu_custom_call.1} parent=55 // pred_check_branch
          %402 = sbr.rel (%p400) target = $region76
        $region75: #{tpu_custom_call.1} parent=55 // pred_region
          %403 = dma.done [#allocation9], 1024
        $region76: #{tpu_custom_call.1} parent=55 // pred_fallthru
          _
        // Predicated region
        $region77: #{tpu_custom_call.1} parent=55 // pred_check
          %p404 = pneg %p204
        $region78: #{tpu_custom_call.1} parent=55 // pred_check_branch
          %406 = sbr.rel (%p404) target = $region80
        $region79: #{tpu_custom_call.1} parent=55 // pred_region
          %407 = dma.done [#allocation12], 2048
        $region80: #{tpu_custom_call.1} parent=55 // pred_fallthru
          _
        %s408 = sand.u32 %s39, 1
        %s409 = scalar_lea.sflag [#allocation3], %s408
        %s410 = sand.u32 %s39, 1
        %s411 = smul.addr %s410, 8
        %s412 = scalar_lea.vmem [#allocation2], %s411
        %p413 = pneg %p52
        %p414 = pneg %p49
        %s415 = sand.u32 %s31, 1
        %s416 = scalar_lea.sflag [#allocation6], %s415
        %s417 = sand.u32 %s65, 1
        %s418 = smul.addr %s417, 8
        %s419 = scalar_lea.vmem [#allocation5], %s418
        %p420 = pneg %p78
        %p421 = pneg %p75
        %p422 = pneg %p99
        %p423 = pneg %p96
        %p424 = pneg %p120
        %p425 = pneg %p117
        %p426 = pneg %p141
        %p427 = pneg %p138
        %p428 = pneg %p162
        %p429 = pneg %p159
        %p430 = pneg %p183
        %p431 = pneg %p180
        %p432 = pneg %p204
        %p433 = pneg %p201
        %p434 = pneg %p225
        %p435 = pneg %p222
        %p436 = pneg %p251
        %p437 = pneg %p248
        %s438 = sand.u32 %s238, 1
        %s439 = scalar_lea.sflag [#allocation4], %s438
        %s440 = sand.u32 %s238, 1
        %s441 = smul.addr %s440, 8
        %s442 = scalar_lea.vmem [#allocation13], %s441
        %v443 = vld [vmem:[%s378] sm:$0xff]
        %v444 = vld [vmem:[#allocation7] sm:$0xff]
        %v445 = vld [vmem:[#allocation7 + $0x8] sm:$0xff]
        %v446 = vld [vmem:[#allocation7 + $0x10] sm:$0xff]
        %v447 = vld [vmem:[#allocation7 + $0x18] sm:$0xff]
        %v448 = vld [vmem:[%s3] sm:$0x1]
        %v450 = vlaneseq
        %v451 = vshrl.u32 %v450, 7
        %v452 = vsub.s32 0, %v451
        %v453 = vrot.slane %v448, %v452
        %vm455 = vcmask 261120
        %v457 = vsel %vm455, %v443, 0
        %459 = vmatprep.subr.mxu0 0.0
        %460 = vmatpush1.msra.mxu0 %v444
        %461 = vmatprep.subr.mxu0 0.0
        %462 = vmatpush1.msra.mxu0 %v445
        %463 = vmatprep.subr.mxu0 0.0
        %464 = vmatpush1.msra.mxu0 %v446
        %465 = vmatprep.subr.mxu0 0.0
        %466 = vmatpush1.msra.mxu0 %v447
        %467 = vmatprep.subr.mxu0 0.0
        %468 = vmatpush1.msra.mxu0 0.0
        %469 = vmatprep.subr.mxu0 0.0
        %470 = vmatpush1.msra.mxu0 0.0
        %471 = vmatprep.subr.mxu0 0.0
        %472 = vmatpush1.msra.mxu0 0.0
        %473 = vmatprep.subr.mxu0 0.0
        %474 = vmatpush1.msra.mxu0 0.0
        %475 = vmatprep.subr.mxu0 0.0
        %476 = vmatpush1.msra.mxu0 0.0
        %477 = vmatprep.subr.mxu0 0.0
        %478 = vmatpush1.msra.mxu0 0.0
        %479 = vmatprep.subr.mxu0 0.0
        %480 = vmatpush1.msra.mxu0 0.0
        %481 = vmatprep.subr.mxu0 0.0
        %482 = vmatpush1.msra.mxu0 0.0
        %483 = vmatprep.subr.mxu0 0.0
        %484 = vmatpush1.msra.mxu0 0.0
        %485 = vmatprep.subr.mxu0 0.0
        %486 = vmatpush1.msra.mxu0 0.0
        %487 = vmatprep.subr.mxu0 0.0
        %488 = vmatpush1.msra.mxu0 0.0
        %489 = vmatprep.subr.mxu0 0.0
        %490 = vmatpush1.msra.mxu0 0.0
        %491 = vmatprep.subr.mxu0 0.0
        %492 = vmatpush1.msra.mxu0 0.0
        %493 = vmatprep.subr.mxu0 0.0
        %494 = vmatpush1.msra.mxu0 0.0
        %495 = vmatprep.subr.mxu0 0.0
        %496 = vmatpush1.msra.mxu0 0.0
        %497 = vmatprep.subr.mxu0 0.0
        %498 = vmatpush1.msra.mxu0 0.0
        %499 = vmatprep.subr.mxu0 0.0
        %500 = vmatpush1.msra.mxu0 0.0
        %501 = vmatprep.subr.mxu0 0.0
        %502 = vmatpush1.msra.mxu0 0.0
        %503 = vmatprep.subr.mxu0 0.0
        %504 = vmatpush1.msra.mxu0 0.0
        %505 = vmatprep.subr.mxu0 0.0
        %506 = vmatpush1.msra.mxu0 0.0
        %507 = vmatprep.subr.mxu0 0.0
        %508 = vmatpush1.msra.mxu0 0.0
        %509 = vmatprep.subr.mxu0 0.0
        %510 = vmatpush1.msra.mxu0 0.0
        %511 = vmatprep.subr.mxu0 0.0
        %512 = vmatpush1.msra.mxu0 0.0
        %513 = vmatprep.subr.mxu0 0.0
        %514 = vmatpush1.msra.mxu0 0.0
        %515 = vmatprep.subr.mxu0 0.0
        %516 = vmatpush1.msra.mxu0 0.0
        %517 = vmatprep.subr.mxu0 0.0
        %518 = vmatpush1.msra.mxu0 0.0
        %519 = vmatprep.subr.mxu0 0.0
        %520 = vmatpush1.msra.mxu0 0.0
        %521 = vmatprep.subr.mxu0 0.0
        %522 = vmatpush1.msra.mxu0 0.0
        %523 = vmatprep.mubr.f32.mxu0 0.0
        %524 = vmatmul.mubr.f32.gmra.mrb[0].mxu0 %v457
        %v525 = vpop.f32.mrb[0].mxu0
        %v526 = vadd.f32 %v453, %v525
        %v527 = vpop.f32.mrb[0].mxu0
        %528 = vdwg.mxu0
        %v529 = vmax.f32 %v526, 0.0
        %v530 = vld [vmem:[#allocation8] sm:$0xff]
        %v531 = vld [vmem:[#allocation8 + $0x8] sm:$0xff]
        %v532 = vld [vmem:[#allocation8 + $0x10] sm:$0xff]
        %v533 = vld [vmem:[#allocation8 + $0x18] sm:$0xff]
        %v534 = vld [vmem:[#allocation8 + $0x20] sm:$0xff]
        %v535 = vld [vmem:[#allocation8 + $0x28] sm:$0xff]
        %v536 = vld [vmem:[#allocation8 + $0x30] sm:$0xff]
        %v537 = vld [vmem:[#allocation8 + $0x38] sm:$0xff]
        %v538 = vld [vmem:[#allocation8 + $0x40] sm:$0xff]
        %v539 = vld [vmem:[#allocation8 + $0x48] sm:$0xff]
        %v540 = vld [vmem:[#allocation8 + $0x50] sm:$0xff]
        %v541 = vld [vmem:[#allocation8 + $0x58] sm:$0xff]
        %v542 = vld [vmem:[#allocation8 + $0x60] sm:$0xff]
        %v543 = vld [vmem:[#allocation8 + $0x68] sm:$0xff]
        %v544 = vld [vmem:[#allocation8 + $0x70] sm:$0xff]
        %v545 = vld [vmem:[#allocation8 + $0x78] sm:$0xff]
        %v546 = vld [vmem:[%s387] sm:$0xff]
        %v547 = vld [vmem:[#allocation10] sm:$0xff]
        %v548 = vld [vmem:[#allocation10 + $0x8] sm:$0xff]
        %v549 = vld [vmem:[#allocation10 + $0x10] sm:$0xff]
        %v550 = vld [vmem:[#allocation10 + $0x18] sm:$0xff]
        %v551 = vld [vmem:[#allocation10 + $0x20] sm:$0xff]
        %v552 = vld [vmem:[#allocation10 + $0x28] sm:$0xff]
        %v553 = vld [vmem:[#allocation10 + $0x30] sm:$0xff]
        %v554 = vld [vmem:[#allocation10 + $0x38] sm:$0xff]
        %v555 = vld [vmem:[%s6] sm:$0x1]
        %v557 = vlaneseq
        %v558 = vshrl.u32 %v557, 7
        %v559 = vsub.s32 0, %v558
        %v560 = vrot.slane %v555, %v559
        %vm562 = vcmask 523264
        %v564 = vsel %vm562, %v546, 0
        %566 = vmatprep.subr.mxu0 0.0
        %567 = vmatpush1.msra.mxu0 %v547
        %568 = vmatprep.subr.mxu0 0.0
        %569 = vmatpush1.msra.mxu0 %v548
        %570 = vmatprep.subr.mxu0 0.0
        %571 = vmatpush1.msra.mxu0 %v549
        %572 = vmatprep.subr.mxu0 0.0
        %573 = vmatpush1.msra.mxu0 %v550
        %574 = vmatprep.subr.mxu0 0.0
        %575 = vmatpush1.msra.mxu0 %v551
        %576 = vmatprep.subr.mxu0 0.0
        %577 = vmatpush1.msra.mxu0 %v552
        %578 = vmatprep.subr.mxu0 0.0
        %579 = vmatpush1.msra.mxu0 %v553
        %580 = vmatprep.subr.mxu0 0.0
        %581 = vmatpush1.msra.mxu0 %v554
        %582 = vmatprep.subr.mxu0 0.0
        %583 = vmatpush1.msra.mxu0 0.0
        %584 = vmatprep.subr.mxu0 0.0
        %585 = vmatpush1.msra.mxu0 0.0
        %586 = vmatprep.subr.mxu0 0.0
        %587 = vmatpush1.msra.mxu0 0.0
        %588 = vmatprep.subr.mxu0 0.0
        %589 = vmatpush1.msra.mxu0 0.0
        %590 = vmatprep.subr.mxu0 0.0
        %591 = vmatpush1.msra.mxu0 0.0
        %592 = vmatprep.subr.mxu0 0.0
        %593 = vmatpush1.msra.mxu0 0.0
        %594 = vmatprep.subr.mxu0 0.0
        %595 = vmatpush1.msra.mxu0 0.0
        %596 = vmatprep.subr.mxu0 0.0
        %597 = vmatpush1.msra.mxu0 0.0
        %598 = vmatprep.subr.mxu0 0.0
        %599 = vmatpush1.msra.mxu0 0.0
        %600 = vmatprep.subr.mxu0 0.0
        %601 = vmatpush1.msra.mxu0 0.0
        %602 = vmatprep.subr.mxu0 0.0
        %603 = vmatpush1.msra.mxu0 0.0
        %604 = vmatprep.subr.mxu0 0.0
        %605 = vmatpush1.msra.mxu0 0.0
        %606 = vmatprep.subr.mxu0 0.0
        %607 = vmatpush1.msra.mxu0 0.0
        %608 = vmatprep.subr.mxu0 0.0
        %609 = vmatpush1.msra.mxu0 0.0
        %610 = vmatprep.subr.mxu0 0.0
        %611 = vmatpush1.msra.mxu0 0.0
        %612 = vmatprep.subr.mxu0 0.0
        %613 = vmatpush1.msra.mxu0 0.0
        %614 = vmatprep.subr.mxu0 0.0
        %615 = vmatpush1.msra.mxu0 0.0
        %616 = vmatprep.subr.mxu0 0.0
        %617 = vmatpush1.msra.mxu0 0.0
        %618 = vmatprep.subr.mxu0 0.0
        %619 = vmatpush1.msra.mxu0 0.0
        %620 = vmatprep.subr.mxu0 0.0
        %621 = vmatpush1.msra.mxu0 0.0
        %622 = vmatprep.subr.mxu0 0.0
        %623 = vmatpush1.msra.mxu0 0.0
        %624 = vmatprep.subr.mxu0 0.0
        %625 = vmatpush1.msra.mxu0 0.0
        %626 = vmatprep.subr.mxu0 0.0
        %627 = vmatpush1.msra.mxu0 0.0
        %628 = vmatprep.subr.mxu0 0.0
        %629 = vmatpush1.msra.mxu0 0.0
        %630 = vmatprep.mubr.f32.mxu0 0.0
        %631 = vmatmul.mubr.f32.gmra.mrb[0].mxu0 %v564
        %v632 = vpop.f32.mrb[0].mxu0
        %v633 = vadd.f32 %v560, %v632
        %v634 = vpop.f32.mrb[0].mxu0
        %635 = vdwg.mxu0
        %v636 = vmax.f32 %v633, 0.0
        %v637 = vld [vmem:[#allocation11] sm:$0xff]
        %v638 = vld [vmem:[#allocation11 + $0x8] sm:$0xff]
        %v639 = vld [vmem:[#allocation11 + $0x10] sm:$0xff]
        %v640 = vld [vmem:[#allocation11 + $0x18] sm:$0xff]
        %v641 = vld [vmem:[#allocation11 + $0x20] sm:$0xff]
        %v642 = vld [vmem:[#allocation11 + $0x28] sm:$0xff]
        %v643 = vld [vmem:[#allocation11 + $0x30] sm:$0xff]
        %v644 = vld [vmem:[#allocation11 + $0x38] sm:$0xff]
        %v645 = vld [vmem:[#allocation11 + $0x40] sm:$0xff]
        %v646 = vld [vmem:[#allocation11 + $0x48] sm:$0xff]
        %v647 = vld [vmem:[#allocation11 + $0x50] sm:$0xff]
        %v648 = vld [vmem:[#allocation11 + $0x58] sm:$0xff]
        %v649 = vld [vmem:[#allocation11 + $0x60] sm:$0xff]
        %v650 = vld [vmem:[#allocation11 + $0x68] sm:$0xff]
        %v651 = vld [vmem:[#allocation11 + $0x70] sm:$0xff]
        %v652 = vld [vmem:[#allocation11 + $0x78] sm:$0xff]
        %653 = vmatprep.subr.mxu0 0.0
        %654 = vmatpush1.msra.mxu0 %v637
        %655 = vmatprep.subr.mxu0 0.0
        %656 = vmatpush1.msra.mxu0 %v638
        %657 = vmatprep.subr.mxu0 0.0
        %658 = vmatpush1.msra.mxu0 %v639
        %659 = vmatprep.subr.mxu0 0.0
        %660 = vmatpush1.msra.mxu0 %v640
        %661 = vmatprep.subr.mxu0 0.0
        %662 = vmatpush1.msra.mxu0 %v641
        %663 = vmatprep.subr.mxu0 0.0
        %664 = vmatpush1.msra.mxu0 %v642
        %665 = vmatprep.subr.mxu0 0.0
        %666 = vmatpush1.msra.mxu0 %v643
        %667 = vmatprep.subr.mxu0 0.0
        %668 = vmatpush1.msra.mxu0 %v644
        %669 = vmatprep.subr.mxu0 0.0
        %670 = vmatpush1.msra.mxu0 %v645
        %671 = vmatprep.subr.mxu0 0.0
        %672 = vmatpush1.msra.mxu0 %v646
        %673 = vmatprep.subr.mxu0 0.0
        %674 = vmatpush1.msra.mxu0 %v647
        %675 = vmatprep.subr.mxu0 0.0
        %676 = vmatpush1.msra.mxu0 %v648
        %677 = vmatprep.subr.mxu0 0.0
        %678 = vmatpush1.msra.mxu0 %v649
        %679 = vmatprep.subr.mxu0 0.0
        %680 = vmatpush1.msra.mxu0 %v650
        %681 = vmatprep.subr.mxu0 0.0
        %682 = vmatpush1.msra.mxu0 %v651
        %683 = vmatprep.subr.mxu0 0.0
        %684 = vmatpush1.msra.mxu0 %v652
        %685 = vmatprep.subr.mxu0 0.0
        %686 = vmatpush1.msra.mxu0 0.0
        %687 = vmatprep.subr.mxu0 0.0
        %688 = vmatpush1.msra.mxu0 0.0
        %689 = vmatprep.subr.mxu0 0.0
        %690 = vmatpush1.msra.mxu0 0.0
        %691 = vmatprep.subr.mxu0 0.0
        %692 = vmatpush1.msra.mxu0 0.0
        %693 = vmatprep.subr.mxu0 0.0
        %694 = vmatpush1.msra.mxu0 0.0
        %695 = vmatprep.subr.mxu0 0.0
        %696 = vmatpush1.msra.mxu0 0.0
        %697 = vmatprep.subr.mxu0 0.0
        %698 = vmatpush1.msra.mxu0 0.0
        %699 = vmatprep.subr.mxu0 0.0
        %700 = vmatpush1.msra.mxu0 0.0
        %701 = vmatprep.subr.mxu0 0.0
        %702 = vmatpush1.msra.mxu0 0.0
        %703 = vmatprep.subr.mxu0 0.0
        %704 = vmatpush1.msra.mxu0 0.0
        %705 = vmatprep.subr.mxu0 0.0
        %706 = vmatpush1.msra.mxu0 0.0
        %707 = vmatprep.subr.mxu0 0.0
        %708 = vmatpush1.msra.mxu0 0.0
        %709 = vmatprep.subr.mxu0 0.0
        %710 = vmatpush1.msra.mxu0 0.0
        %711 = vmatprep.subr.mxu0 0.0
        %712 = vmatpush1.msra.mxu0 0.0
        %713 = vmatprep.subr.mxu0 0.0
        %714 = vmatpush1.msra.mxu0 0.0
        %715 = vmatprep.subr.mxu0 0.0
        %716 = vmatpush1.msra.mxu0 0.0
        %717 = vmatprep.mubr.f32.mxu0 0.0
        %718 = vmatmul.mubr.f32.gmra.mrb[0].mxu0 %v636
        %v719 = vpop.f32.mrb[0].mxu0
        %v720 = vadd.f32 0.0, %v719
        %v721 = vpop.f32.mrb[0].mxu0
        %722 = vdwg.mxu0
        %723 = vmatprep.subr.mxu0 0.0
        %724 = vmatpush1.msra.mxu0 %v530
        %725 = vmatprep.subr.mxu0 0.0
        %726 = vmatpush1.msra.mxu0 %v531
        %727 = vmatprep.subr.mxu0 0.0
        %728 = vmatpush1.msra.mxu0 %v532
        %729 = vmatprep.subr.mxu0 0.0
        %730 = vmatpush1.msra.mxu0 %v533
        %731 = vmatprep.subr.mxu0 0.0
        %732 = vmatpush1.msra.mxu0 %v534
        %733 = vmatprep.subr.mxu0 0.0
        %734 = vmatpush1.msra.mxu0 %v535
        %735 = vmatprep.subr.mxu0 0.0
        %736 = vmatpush1.msra.mxu0 %v536
        %737 = vmatprep.subr.mxu0 0.0
        %738 = vmatpush1.msra.mxu0 %v537
        %739 = vmatprep.subr.mxu0 0.0
        %740 = vmatpush1.msra.mxu0 %v538
        %741 = vmatprep.subr.mxu0 0.0
        %742 = vmatpush1.msra.mxu0 %v539
        %743 = vmatprep.subr.mxu0 0.0
        %744 = vmatpush1.msra.mxu0 %v540
        %745 = vmatprep.subr.mxu0 0.0
        %746 = vmatpush1.msra.mxu0 %v541
        %747 = vmatprep.subr.mxu0 0.0
        %748 = vmatpush1.msra.mxu0 %v542
        %749 = vmatprep.subr.mxu0 0.0
        %750 = vmatpush1.msra.mxu0 %v543
        %751 = vmatprep.subr.mxu0 0.0
        %752 = vmatpush1.msra.mxu0 %v544
        %753 = vmatprep.subr.mxu0 0.0
        %754 = vmatpush1.msra.mxu0 %v545
        %755 = vmatprep.subr.mxu0 0.0
        %756 = vmatpush1.msra.mxu0 0.0
        %757 = vmatprep.subr.mxu0 0.0
        %758 = vmatpush1.msra.mxu0 0.0
        %759 = vmatprep.subr.mxu0 0.0
        %760 = vmatpush1.msra.mxu0 0.0
        %761 = vmatprep.subr.mxu0 0.0
        %762 = vmatpush1.msra.mxu0 0.0
        %763 = vmatprep.subr.mxu0 0.0
        %764 = vmatpush1.msra.mxu0 0.0
        %765 = vmatprep.subr.mxu0 0.0
        %766 = vmatpush1.msra.mxu0 0.0
        %767 = vmatprep.subr.mxu0 0.0
        %768 = vmatpush1.msra.mxu0 0.0
        %769 = vmatprep.subr.mxu0 0.0
        %770 = vmatpush1.msra.mxu0 0.0
        %771 = vmatprep.subr.mxu0 0.0
        %772 = vmatpush1.msra.mxu0 0.0
        %773 = vmatprep.subr.mxu0 0.0
        %774 = vmatpush1.msra.mxu0 0.0
        %775 = vmatprep.subr.mxu0 0.0
        %776 = vmatpush1.msra.mxu0 0.0
        %777 = vmatprep.subr.mxu0 0.0
        %778 = vmatpush1.msra.mxu0 0.0
        %779 = vmatprep.subr.mxu0 0.0
        %780 = vmatpush1.msra.mxu0 0.0
        %781 = vmatprep.subr.mxu0 0.0
        %782 = vmatpush1.msra.mxu0 0.0
        %783 = vmatprep.subr.mxu0 0.0
        %784 = vmatpush1.msra.mxu0 0.0
        %785 = vmatprep.subr.mxu0 0.0
        %786 = vmatpush1.msra.mxu0 0.0
        %787 = vmatprep.mubr.f32.mxu0 0.0
        %788 = vmatmul.mubr.f32.gmra.mrb[0].mxu0 %v529
        %v789 = vpop.f32.mrb[0].mxu0
        %v790 = vadd.f32 %v720, %v789
        %v791 = vpop.f32.mrb[0].mxu0
        %792 = vdwg.mxu0
        %v793 = vld [vmem:[%s8] sm:$0x1]
        %v795 = vlaneseq
        %v796 = vshrl.u32 %v795, 7
        %v797 = vsub.s32 0, %v796
        %v798 = vrot.slane %v793, %v797
        %v800 = vadd.f32 %v790, %v798
        %801 = vst [vmem:[%s442] sm:$0xff] %v800
        %s802 = sand.u32 %s238, 1
        %s803 = scalar_lea.sflag [#allocation4], %s802
        %s804 = sand.u32 %s238, 1
        %s805 = smul.addr %s804, 8
        %s806 = scalar_lea.vmem [#allocation13], %s805
        // Predicated region
        $region81: #{tpu_custom_call.1} parent=55 // pred_check
          %p807 = pneg %p248
        $region82: #{tpu_custom_call.1} parent=55 // pred_check_branch
          %809 = sbr.rel (%p807) target = $region84
        $region83: #{tpu_custom_call.1} parent=55 // pred_region
          %s811 = ssub.s32 128, 128
          %812 = vsyncadd %s803, %s811
          %s813 = smul.addr %s31, 128
          %s814 = scalar_lea.hbm %s9, %s813
          %s816 = sshll.u32 %s806, 4
          %s817 = int_to_ptr.vmem [resolvable:$true] %s816
          %819 = dma.vmem_to_hbm [thread:$0]  %s817, 128, %s814, %s803
        $region84: #{tpu_custom_call.1} parent=55 // pred_fallthru
          _
      $region56: #{tpu_custom_call.1} parent=5 // pred_fallthru
        _
      %p820 = scmp.le.s32.totalorder 2, %s26
      // Predicated region
      $region85: #{tpu_custom_call.1} parent=5 // pred_check
        %p821 = pneg %p820
      $region86: #{tpu_custom_call.1} parent=5 // pred_check_branch
        %823 = sbr.rel (%p821) target = $region88
      $region87: #{tpu_custom_call.1} parent=5 // pred_region
        %s824 = ssub.s32 %s26, 2
        // Predicated region
        $region89: #{tpu_custom_call.1} parent=87 // pred_check
          %p825 = pneg %p254
        $region90: #{tpu_custom_call.1} parent=87 // pred_check_branch
          %827 = sbr.rel (%p825) target = $region92
        $region91: #{tpu_custom_call.1} parent=87 // pred_region
          %s828 = sand.u32 %s239, 1
          %s829 = scalar_lea.sflag [#allocation4], %s828
          %s830 = sand.u32 %s239, 1
          %s831 = smul.addr %s830, 8
          %s832 = scalar_lea.vmem [#allocation13], %s831
          %833 = dma.done %s829, 128
        $region92: #{tpu_custom_call.1} parent=87 // pred_fallthru
          _
      $region88: #{tpu_custom_call.1} parent=5 // pred_fallthru
        _
    $region6: #{tpu_custom_call.1} parent=1 // loop_footer
      %s30 = sadd.s32 1, %s26
    $region7: #{tpu_custom_call.1} parent=1 // loop_footer_branch
      %25 = sbr.rel target = $region3
    $region8: #{tpu_custom_call.1} parent=1 // loop_exit
      _
    %834 = vsyncpa [#allocation3], 1
    %s835 = scalar_lea.sflag [#allocation3], 1
    %836 = vsyncpa %s835, 1
    %837 = vsyncpa [#allocation6], 1
    %s838 = scalar_lea.sflag [#allocation6], 1
    %839 = vsyncpa %s838, 1
    %840 = vsyncpa [#allocation9], 1
    %841 = vsyncpa [#allocation12], 1
    %842 = vsyncpa [#allocation4], 1
    %s843 = scalar_lea.sflag [#allocation4], 1
    %844 = vsyncpa %s843, 1

</llo_original>
